<compile_context>
chip_gen: v5e
topology: v5e:2x2
jax: 0.10.0
libtpu: 0.0.40
codegen_flags: <defaults>
</compile_context>

<pallas_src>
import functools
import math

import jax
import jax.numpy as jnp
from jax.experimental import pallas as pl
from jax.experimental.pallas import tpu as pltpu


# ---------------------------------------------------------------------------
# Fused kernel: QKV proj + per-head causal attention + concat + output proj
# ---------------------------------------------------------------------------
def _mha_fused_kernel(x_ref, wqkv_ref, wproj_ref, bproj_ref, o_ref,
                      *, n_head, head_size, matmul_dtype):
    # x_ref:     (1, T, C)           one batch slab
    # wqkv_ref:  (C, 3*n_head*H)     fused qkv weight, columns = [q_all | k_all | v_all]
    # wproj_ref: (n_head*H, C)       output projection (already transposed: concat @ W)
    # bproj_ref: (1, C)              output projection bias
    # o_ref:     (1, T, C)           final output (lane-dense, C wide)
    T = x_ref.shape[1]
    H = head_size
    nH = n_head * H

    def _cast(a):
        return a.astype(matmul_dtype) if matmul_dtype is not None else a

    x = x_ref[0]                         # (T, C)
    w_qkv = wqkv_ref[...]                # (C, 3*nH)

    # One wide QKV matmul for all heads (f32 accumulate on the MXU).
    qkv = jnp.dot(_cast(x), _cast(w_qkv),
                  preferred_element_type=jnp.float32)          # (T, 3*nH)

    scale = 1.0 / math.sqrt(H)
    q_all = qkv[:, 0 * nH:1 * nH] * scale   # pre-scale q (T, nH), not s (T, T)
    k_all = qkv[:, 1 * nH:2 * nH]
    v_all = qkv[:, 2 * nH:3 * nH]

    # Causal mask, built once and reused by every head.
    row = jax.lax.broadcasted_iota(jnp.int32, (T, T), 0)
    col = jax.lax.broadcasted_iota(jnp.int32, (T, T), 1)
    causal = row >= col
    # -inf is safe: the diagonal is always unmasked, so each softmax row has a
    # finite max (no exp(-inf - (-inf)) NaN).

    # q @ k^T contracting the last dims -> no explicit k.T / XLU transpose.
    dn = (((1,), (1,)), ((), ()))

    head_outs = []
    for h in range(n_head):                      # unrolled at trace time
        q = q_all[:, h * H:(h + 1) * H]          # (T, H)
        k = k_all[:, h * H:(h + 1) * H]
        v = v_all[:, h * H:(h + 1) * H]

        s = jax.lax.dot_general(q, k, dn,
                                preferred_element_type=jnp.float32)   # (T, T)
        s = jnp.where(causal, s, -jnp.inf)

        m = jnp.max(s, axis=-1, keepdims=True)
        p = jnp.exp(s - m)
        l = jnp.sum(p, axis=-1, keepdims=True)

        o_h = jnp.dot(_cast(p), _cast(v),
                      preferred_element_type=jnp.float32)             # (T, H)
        # Deferred normalization: divide the (T, H) output, not the (T, T) probs.
        o_h = o_h * pl.reciprocal(l, approx=False)
        head_outs.append(o_h)

    concat = jnp.concatenate(head_outs, axis=-1)                      # (T, nH)

    # Fused output projection + bias, written lane-dense (C wide).
    y = jnp.dot(_cast(concat), _cast(wproj_ref[...]),
                preferred_element_type=jnp.float32)                   # (T, C)
    y = y + bproj_ref[...].astype(jnp.float32)
    o_ref[0] = y.astype(o_ref.dtype)


# ---------------------------------------------------------------------------
# Wrapper
# ---------------------------------------------------------------------------
def multi_head_attention(x, wqkv_heads, w_proj, b_proj, *, matmul_dtype=None):
    """
    x:          (B, T, C)           activations
    wqkv_heads: (n_head, 3*H, C)    per-head nn.Linear weight (PyTorch layout, no bias)
    w_proj:     (C, n_head*H)       projection nn.Linear weight (PyTorch layout)
    b_proj:     (C,)                projection bias
    matmul_dtype: optional dtype (e.g. jnp.bfloat16) to feed the MXU on v6e/v7x;
                  accumulation stays f32. Default: keep the input dtype.
    Dropout layers are treated as identity (inference mode).
    """
    B, T, C = x.shape
    n_head, threeH, _ = wqkv_heads.shape
    H = threeH // 3
    nH = n_head * H

    # --- one-time weight layout prep (would be done at model-load time) -----
    # Split each head's stacked [Wq; Wk; Wv] (each (H, C)) and build a fused
    # (C, 3*n_head*H) matrix with column groups [q_all | k_all | v_all] so the
    # kernel does y = x @ W in a single wide matmul (matches x @ W_h.T per head).
    wq = jnp.transpose(wqkv_heads[:, 0 * H:1 * H, :], (2, 0, 1)).reshape(C, nH)
    wk = jnp.transpose(wqkv_heads[:, 1 * H:2 * H, :], (2, 0, 1)).reshape(C, nH)
    wv = jnp.transpose(wqkv_heads[:, 2 * H:3 * H, :], (2, 0, 1)).reshape(C, nH)
    w_qkv_fused = jnp.concatenate([wq, wk, wv], axis=1)     # (C, 3*nH)
    w_proj_t = w_proj.T                                     # (nH, C)  (concat @ W_t)
    b_proj_2d = b_proj.reshape(1, C)

    kernel = functools.partial(_mha_fused_kernel,
                               n_head=n_head, head_size=H,
                               matmul_dtype=matmul_dtype)

    out = pl.pallas_call(
        kernel,
        out_shape=jax.ShapeDtypeStruct((B, T, C), x.dtype),
        grid=(B,),
        in_specs=[
            pl.BlockSpec((1, T, C), lambda b: (b, 0, 0)),          # x: fetched once per b
            pl.BlockSpec((C, 3 * nH), lambda b: (0, 0)),           # weights stay resident
            pl.BlockSpec((nH, C), lambda b: (0, 0)),
            pl.BlockSpec((1, C), lambda b: (0, 0)),
        ],
        out_specs=pl.BlockSpec((1, T, C), lambda b: (b, 0, 0)),    # lane-dense (C wide)
        compiler_params=pltpu.CompilerParams(
            dimension_semantics=("parallel",)),                    # shard batches over TCs
    )(x, w_qkv_fused, w_proj_t, b_proj_2d)

    return out


# ---------------------------------------------------------------------------
# Pure-JAX reference (mirrors the PyTorch forward) for a sanity check
# ---------------------------------------------------------------------------
def _reference(x, wqkv_heads, w_proj, b_proj):
    B, T, C = x.shape
    n_head, threeH, _ = wqkv_heads.shape
    H = threeH // 3
    mask = jnp.tril(jnp.ones((T, T), dtype=bool))
    outs = []
    for h in range(n_head):
        qkv = x @ wqkv_heads[h].T                       # (B, T, 3H)  (nn.Linear, no bias)
        q, k, v = qkv[..., :H], qkv[..., H:2 * H], qkv[..., 2 * H:]
        s = jnp.einsum("btd,bsd->bts", q, k) / math.sqrt(H)
        s = jnp.where(mask[None], s, -jnp.inf)
        p = jax.nn.softmax(s, axis=-1)
        outs.append(jnp.einsum("bts,bsd->btd", p, v))
    concat = jnp.concatenate(outs, axis=-1)             # (B, T, n_head*H)
    return concat @ w_proj.T + b_proj                   # nn.Linear(head_size*n_head, n_embd)


if __name__ == "__main__":
    # Small, module-consistent shapes: n_embd=32, n_head=4, head_size=8, seq=8, batch=2.
    B, T, n_embd, n_head, head_size = 2, 8, 32, 4, 8

    key = jax.random.PRNGKey(0)
    k_x, k_qkv, k_pw, k_pb = jax.random.split(key, 4)

    x = jax.random.normal(k_x, (B, T, n_embd), dtype=jnp.float32)
    # Per-head qkv weights in PyTorch nn.Linear layout: (n_head, 3*head_size, n_embd).
    wqkv_heads = jax.random.normal(
        k_qkv, (n_head, 3 * head_size, n_embd),
        dtype=jnp.float32) * (1.0 / math.sqrt(n_embd))
    # Projection weight in PyTorch layout: (n_embd, n_head*head_size).
    w_proj = jax.random.normal(
        k_pw, (n_embd, n_head * head_size),
        dtype=jnp.float32) * (1.0 / math.sqrt(n_head * head_size))
    b_proj = jax.random.normal(k_pb, (n_embd,), dtype=jnp.float32) * 0.01

    out = multi_head_attention(x, wqkv_heads, w_proj, b_proj)
    out = jax.block_until_ready(out)

    ref = _reference(x, wqkv_heads, w_proj, b_proj)
    assert out.shape == (B, T, n_embd)
    assert jnp.allclose(out, ref, atol=1e-4, rtol=1e-4), "mismatch vs reference"

    print("KERNEL_OK")
</pallas_src>

<mosaic_0001>
module attributes {stable_mosaic.version = 11 : i64} {
  func.func @_mha_fused_kernel(%arg0: i32, %arg1: memref<1x8x32xf32, #tpu.memory_space<vmem>>, %arg2: memref<32x96xf32, #tpu.memory_space<vmem>>, %arg3: memref<32x32xf32, #tpu.memory_space<vmem>>, %arg4: memref<1x32xf32, #tpu.memory_space<vmem>>, %arg5: memref<1x8x32xf32, #tpu.memory_space<vmem>>) attributes {dimension_semantics = [#tpu.dimension_semantics<parallel>], iteration_bounds = array<i64: 2>, scalar_prefetch = 0 : i64, scratch_operands = 0 : i64, tpu.core_type = #tpu.core_type<tc>, window_params = [{transform_indices = @transform_0, window_bounds = array<i64: 1, 8, 32>}, {pipeline_mode = #tpu.pipeline_mode<synchronous>, transform_indices = @transform_1, window_bounds = array<i64: 32, 96>}, {pipeline_mode = #tpu.pipeline_mode<synchronous>, transform_indices = @transform_2, window_bounds = array<i64: 32, 32>}, {pipeline_mode = #tpu.pipeline_mode<synchronous>, transform_indices = @transform_3, window_bounds = array<i64: 1, 32>}, {transform_indices = @transform_4, window_bounds = array<i64: 1, 8, 32>}]} {
    %c0 = arith.constant 0 : index
    %c0_0 = arith.constant 0 : index
    %c0_1 = arith.constant 0 : index
    %0 = vector.load %arg1[%c0, %c0_0, %c0_1] : memref<1x8x32xf32, #tpu.memory_space<vmem>>, vector<1x8x32xf32>
    %1 = vector.shape_cast %0 : vector<1x8x32xf32> to vector<8x32xf32>
    %c0_2 = arith.constant 0 : index
    %c0_3 = arith.constant 0 : index
    %2 = vector.load %arg2[%c0_2, %c0_3] : memref<32x96xf32, #tpu.memory_space<vmem>>, vector<32x96xf32>
    %cst = arith.constant dense<0.000000e+00> : vector<8x96xf32>
    %3 = tpu.matmul %1, %2, %cst {dimension_numbers = #tpu.dot_dimension_numbers<[1], [0], [0], [1], [0, 0, 1, 1], [], []>} : vector<8x32xf32>, vector<32x96xf32>, vector<8x96xf32> -> vector<8x96xf32>
    %4 = vector.extract_strided_slice %3 {offsets = [0, 0], sizes = [8, 32], strides = [1, 1]} : vector<8x96xf32> to vector<8x32xf32>
    %cst_4 = arith.constant 0.353553385 : f32
    %5 = vector.broadcast %cst_4 : f32 to vector<8x32xf32>
    %6 = arith.mulf %4, %5 : vector<8x32xf32>
    %7 = vector.extract_strided_slice %3 {offsets = [0, 32], sizes = [8, 32], strides = [1, 1]} : vector<8x96xf32> to vector<8x32xf32>
    %8 = vector.extract_strided_slice %3 {offsets = [0, 64], sizes = [8, 32], strides = [1, 1]} : vector<8x96xf32> to vector<8x32xf32>
    %9 = tpu.iota {dimensions = array<i32: 0>} : vector<8x8xi32>
    %10 = tpu.iota {dimensions = array<i32: 1>} : vector<8x8xi32>
    %11 = arith.cmpi sge, %9, %10 : vector<8x8xi32>
    %12 = vector.extract_strided_slice %6 {offsets = [0, 0], sizes = [8, 8], strides = [1, 1]} : vector<8x32xf32> to vector<8x8xf32>
    %13 = vector.extract_strided_slice %7 {offsets = [0, 0], sizes = [8, 8], strides = [1, 1]} : vector<8x32xf32> to vector<8x8xf32>
    %14 = vector.extract_strided_slice %8 {offsets = [0, 0], sizes = [8, 8], strides = [1, 1]} : vector<8x32xf32> to vector<8x8xf32>
    %cst_5 = arith.constant dense<0.000000e+00> : vector<8x8xf32>
    %15 = tpu.matmul %12, %13, %cst_5 {dimension_numbers = #tpu.dot_dimension_numbers<[1], [1], [0], [0], [0, 0, 1, 0], [], []>} : vector<8x8xf32>, vector<8x8xf32>, vector<8x8xf32> -> vector<8x8xf32>
    %cst_6 = arith.constant 0xFF800000 : f32
    %16 = vector.broadcast %cst_6 : f32 to vector<8x8xf32>
    %17 = arith.select %11, %15, %16 : vector<8x8xi1>, vector<8x8xf32>
    %cst_7 = arith.constant dense<0xFF800000> : vector<8xf32>
    %18 = vector.multi_reduction <maximumf>, %17, %cst_7 [1] : vector<8x8xf32> to vector<8xf32>
    %19 = vector.shape_cast %18 : vector<8xf32> to vector<8x1xf32>
    %20 = vector.broadcast %19 : vector<8x1xf32> to vector<8x8xf32>
    %21 = arith.subf %17, %20 : vector<8x8xf32>
    %22 = math.exp %21 : vector<8x8xf32>
    %cst_8 = arith.constant dense<0.000000e+00> : vector<8xf32>
    %23 = vector.multi_reduction <add>, %22, %cst_8 [1] : vector<8x8xf32> to vector<8xf32>
    %24 = vector.shape_cast %23 : vector<8xf32> to vector<8x1xf32>
    %cst_9 = arith.constant dense<0.000000e+00> : vector<8x8xf32>
    %25 = tpu.matmul %22, %14, %cst_9 {dimension_numbers = #tpu.dot_dimension_numbers<[1], [0], [0], [1], [0, 0, 1, 1], [], []>} : vector<8x8xf32>, vector<8x8xf32>, vector<8x8xf32> -> vector<8x8xf32>
    %26 = tpu.reciprocal %24 : vector<8x1xf32> -> vector<8x1xf32>
    %27 = vector.broadcast %26 : vector<8x1xf32> to vector<8x8xf32>
    %28 = arith.mulf %25, %27 : vector<8x8xf32>
    %29 = vector.extract_strided_slice %6 {offsets = [0, 8], sizes = [8, 8], strides = [1, 1]} : vector<8x32xf32> to vector<8x8xf32>
    %30 = vector.extract_strided_slice %7 {offsets = [0, 8], sizes = [8, 8], strides = [1, 1]} : vector<8x32xf32> to vector<8x8xf32>
    %31 = vector.extract_strided_slice %8 {offsets = [0, 8], sizes = [8, 8], strides = [1, 1]} : vector<8x32xf32> to vector<8x8xf32>
    %cst_10 = arith.constant dense<0.000000e+00> : vector<8x8xf32>
    %32 = tpu.matmul %29, %30, %cst_10 {dimension_numbers = #tpu.dot_dimension_numbers<[1], [1], [0], [0], [0, 0, 1, 0], [], []>} : vector<8x8xf32>, vector<8x8xf32>, vector<8x8xf32> -> vector<8x8xf32>
    %cst_11 = arith.constant 0xFF800000 : f32
    %33 = vector.broadcast %cst_11 : f32 to vector<8x8xf32>
    %34 = arith.select %11, %32, %33 : vector<8x8xi1>, vector<8x8xf32>
    %cst_12 = arith.constant dense<0xFF800000> : vector<8xf32>
    %35 = vector.multi_reduction <maximumf>, %34, %cst_12 [1] : vector<8x8xf32> to vector<8xf32>
    %36 = vector.shape_cast %35 : vector<8xf32> to vector<8x1xf32>
    %37 = vector.broadcast %36 : vector<8x1xf32> to vector<8x8xf32>
    %38 = arith.subf %34, %37 : vector<8x8xf32>
    %39 = math.exp %38 : vector<8x8xf32>
    %cst_13 = arith.constant dense<0.000000e+00> : vector<8xf32>
    %40 = vector.multi_reduction <add>, %39, %cst_13 [1] : vector<8x8xf32> to vector<8xf32>
    %41 = vector.shape_cast %40 : vector<8xf32> to vector<8x1xf32>
    %cst_14 = arith.constant dense<0.000000e+00> : vector<8x8xf32>
    %42 = tpu.matmul %39, %31, %cst_14 {dimension_numbers = #tpu.dot_dimension_numbers<[1], [0], [0], [1], [0, 0, 1, 1], [], []>} : vector<8x8xf32>, vector<8x8xf32>, vector<8x8xf32> -> vector<8x8xf32>
    %43 = tpu.reciprocal %41 : vector<8x1xf32> -> vector<8x1xf32>
    %44 = vector.broadcast %43 : vector<8x1xf32> to vector<8x8xf32>
    %45 = arith.mulf %42, %44 : vector<8x8xf32>
    %46 = vector.extract_strided_slice %6 {offsets = [0, 16], sizes = [8, 8], strides = [1, 1]} : vector<8x32xf32> to vector<8x8xf32>
    %47 = vector.extract_strided_slice %7 {offsets = [0, 16], sizes = [8, 8], strides = [1, 1]} : vector<8x32xf32> to vector<8x8xf32>
    %48 = vector.extract_strided_slice %8 {offsets = [0, 16], sizes = [8, 8], strides = [1, 1]} : vector<8x32xf32> to vector<8x8xf32>
    %cst_15 = arith.constant dense<0.000000e+00> : vector<8x8xf32>
    %49 = tpu.matmul %46, %47, %cst_15 {dimension_numbers = #tpu.dot_dimension_numbers<[1], [1], [0], [0], [0, 0, 1, 0], [], []>} : vector<8x8xf32>, vector<8x8xf32>, vector<8x8xf32> -> vector<8x8xf32>
    %cst_16 = arith.constant 0xFF800000 : f32
    %50 = vector.broadcast %cst_16 : f32 to vector<8x8xf32>
    %51 = arith.select %11, %49, %50 : vector<8x8xi1>, vector<8x8xf32>
    %cst_17 = arith.constant dense<0xFF800000> : vector<8xf32>
    %52 = vector.multi_reduction <maximumf>, %51, %cst_17 [1] : vector<8x8xf32> to vector<8xf32>
    %53 = vector.shape_cast %52 : vector<8xf32> to vector<8x1xf32>
    %54 = vector.broadcast %53 : vector<8x1xf32> to vector<8x8xf32>
    %55 = arith.subf %51, %54 : vector<8x8xf32>
    %56 = math.exp %55 : vector<8x8xf32>
    %cst_18 = arith.constant dense<0.000000e+00> : vector<8xf32>
    %57 = vector.multi_reduction <add>, %56, %cst_18 [1] : vector<8x8xf32> to vector<8xf32>
    %58 = vector.shape_cast %57 : vector<8xf32> to vector<8x1xf32>
    %cst_19 = arith.constant dense<0.000000e+00> : vector<8x8xf32>
    %59 = tpu.matmul %56, %48, %cst_19 {dimension_numbers = #tpu.dot_dimension_numbers<[1], [0], [0], [1], [0, 0, 1, 1], [], []>} : vector<8x8xf32>, vector<8x8xf32>, vector<8x8xf32> -> vector<8x8xf32>
    %60 = tpu.reciprocal %58 : vector<8x1xf32> -> vector<8x1xf32>
    %61 = vector.broadcast %60 : vector<8x1xf32> to vector<8x8xf32>
    %62 = arith.mulf %59, %61 : vector<8x8xf32>
    %63 = vector.extract_strided_slice %6 {offsets = [0, 24], sizes = [8, 8], strides = [1, 1]} : vector<8x32xf32> to vector<8x8xf32>
    %64 = vector.extract_strided_slice %7 {offsets = [0, 24], sizes = [8, 8], strides = [1, 1]} : vector<8x32xf32> to vector<8x8xf32>
    %65 = vector.extract_strided_slice %8 {offsets = [0, 24], sizes = [8, 8], strides = [1, 1]} : vector<8x32xf32> to vector<8x8xf32>
    %cst_20 = arith.constant dense<0.000000e+00> : vector<8x8xf32>
    %66 = tpu.matmul %63, %64, %cst_20 {dimension_numbers = #tpu.dot_dimension_numbers<[1], [1], [0], [0], [0, 0, 1, 0], [], []>} : vector<8x8xf32>, vector<8x8xf32>, vector<8x8xf32> -> vector<8x8xf32>
    %cst_21 = arith.constant 0xFF800000 : f32
    %67 = vector.broadcast %cst_21 : f32 to vector<8x8xf32>
    %68 = arith.select %11, %66, %67 : vector<8x8xi1>, vector<8x8xf32>
    %cst_22 = arith.constant dense<0xFF800000> : vector<8xf32>
    %69 = vector.multi_reduction <maximumf>, %68, %cst_22 [1] : vector<8x8xf32> to vector<8xf32>
    %70 = vector.shape_cast %69 : vector<8xf32> to vector<8x1xf32>
    %71 = vector.broadcast %70 : vector<8x1xf32> to vector<8x8xf32>
    %72 = arith.subf %68, %71 : vector<8x8xf32>
    %73 = math.exp %72 : vector<8x8xf32>
    %cst_23 = arith.constant dense<0.000000e+00> : vector<8xf32>
    %74 = vector.multi_reduction <add>, %73, %cst_23 [1] : vector<8x8xf32> to vector<8xf32>
    %75 = vector.shape_cast %74 : vector<8xf32> to vector<8x1xf32>
    %cst_24 = arith.constant dense<0.000000e+00> : vector<8x8xf32>
    %76 = tpu.matmul %73, %65, %cst_24 {dimension_numbers = #tpu.dot_dimension_numbers<[1], [0], [0], [1], [0, 0, 1, 1], [], []>} : vector<8x8xf32>, vector<8x8xf32>, vector<8x8xf32> -> vector<8x8xf32>
    %77 = tpu.reciprocal %75 : vector<8x1xf32> -> vector<8x1xf32>
    %78 = vector.broadcast %77 : vector<8x1xf32> to vector<8x8xf32>
    %79 = arith.mulf %76, %78 : vector<8x8xf32>
    %80 = tpu.concatenate %28, %45, %62, %79 in 1 : vector<8x8xf32>, vector<8x8xf32>, vector<8x8xf32>, vector<8x8xf32> -> vector<8x32xf32>
    %c0_25 = arith.constant 0 : index
    %c0_26 = arith.constant 0 : index
    %81 = vector.load %arg3[%c0_25, %c0_26] : memref<32x32xf32, #tpu.memory_space<vmem>>, vector<32x32xf32>
    %cst_27 = arith.constant dense<0.000000e+00> : vector<8x32xf32>
    %82 = tpu.matmul %80, %81, %cst_27 {dimension_numbers = #tpu.dot_dimension_numbers<[1], [0], [0], [1], [0, 0, 1, 1], [], []>} : vector<8x32xf32>, vector<32x32xf32>, vector<8x32xf32> -> vector<8x32xf32>
    %c0_28 = arith.constant 0 : index
    %c0_29 = arith.constant 0 : index
    %83 = vector.load %arg4[%c0_28, %c0_29] : memref<1x32xf32, #tpu.memory_space<vmem>>, vector<1x32xf32>
    %84 = vector.broadcast %83 : vector<1x32xf32> to vector<8x32xf32>
    %85 = arith.addf %82, %84 : vector<8x32xf32>
    %c0_30 = arith.constant 0 : index
    %c0_31 = arith.constant 0 : index
    %c0_32 = arith.constant 0 : index
    %86 = vector.load %arg5[%c0_30, %c0_31, %c0_32] : memref<1x8x32xf32, #tpu.memory_space<vmem>>, vector<1x8x32xf32>
    %87 = vector.shape_cast %86 : vector<1x8x32xf32> to vector<8x32xf32>
    %88 = vector.shape_cast %85 : vector<8x32xf32> to vector<1x8x32xf32>
    tpu.vector_store %arg5[%c0_30, %c0_31, %c0_32], %88 {strides = array<i32>} : memref<1x8x32xf32, #tpu.memory_space<vmem>>, vector<1x8x32xf32>,
    return
  }
  func.func @transform_0(%arg0: i32) -> (i32, i32, i32) {
    %c0_i32 = arith.constant 0 : i32
    %c0_i32_0 = arith.constant 0 : i32
    %c0_i32_1 = arith.constant 0 : i32
    return %arg0, %c0_i32, %c0_i32_0 : i32, i32, i32
  }
  func.func @transform_1(%arg0: i32) -> (i32, i32) {
    %c0_i32 = arith.constant 0 : i32
    %c0_i32_0 = arith.constant 0 : i32
    %c0_i32_1 = arith.constant 0 : i32
    return %c0_i32, %c0_i32_0 : i32, i32
  }
  func.func @transform_2(%arg0: i32) -> (i32, i32) {
    %c0_i32 = arith.constant 0 : i32
    %c0_i32_0 = arith.constant 0 : i32
    %c0_i32_1 = arith.constant 0 : i32
    return %c0_i32, %c0_i32_0 : i32, i32
  }
  func.func @transform_3(%arg0: i32) -> (i32, i32) {
    %c0_i32 = arith.constant 0 : i32
    %c0_i32_0 = arith.constant 0 : i32
    %c0_i32_1 = arith.constant 0 : i32
    return %c0_i32, %c0_i32_0 : i32, i32
  }
  func.func @transform_4(%arg0: i32) -> (i32, i32, i32) {
    %c0_i32 = arith.constant 0 : i32
    %c0_i32_0 = arith.constant 0 : i32
    %c0_i32_1 = arith.constant 0 : i32
    return %arg0, %c0_i32, %c0_i32_0 : i32, i32, i32
  }
}

</mosaic_0001>

<llo_original>
// kernel: tpu_custom_call.1
$region0: #{tpu_custom_call.1}
  #allocation0 [shape = 'u32[]', space=smem, size = 0x4, offset = 0x4, fixed_abs, tag = 'smem constant byte address 0x4 - core index']
  #allocation1 [shape = 'u32[72,128]{1,0:T(1,128)}', space=vmem, size = 0x9000, scoped, tag = 'internal scratch']
  %s0 = inlined_call_operand.hbm [shape: f32[2,8,32], index: 0, kind: input, shape index: {}]
  %s1 = inlined_call_operand.hbm [shape: f32[32,96], index: 1, kind: input, shape index: {}]
  %s2 = inlined_call_operand.hbm [shape: f32[32,32], index: 2, kind: input, shape index: {}]
  %s3 = inlined_call_operand.vmem [shape: f32[1,32], index: 3, kind: input, shape index: {}]
  %s4 = inlined_call_operand.hbm [shape: f32[2,8,32], index: 4, kind: output, shape index: {}]
  %s5 = sld [smem:[#allocation0]]
  $region61: #{tpu_custom_call.1} parent=0
    _
  %s7 = ssub.s32 1, %s5
  %s8 = scalar_select 0, %s7, %s5
  $region1: #{tpu_custom_call.1} parent=0
    #allocation2 [shape = 'u8[8192]{0}', space=vmem, size = 0x2000, scoped, tag = 'input window, operand 0']
    #allocation3 [shape = 's32[2]{0}', space=sflag, size = 0x8, scoped, tag = 'scoped memory for tpu_custom_call.1']
    #allocation4 [shape = 's32[2]{0}', space=sflag, size = 0x8, scoped, tag = 'scoped memory for tpu_custom_call.1']
    #allocation5 [shape = 'u8[16384]{0}', space=vmem, size = 0x4000, scoped, tag = 'input window, operand 1, single buffered']
    #allocation6 [shape = 's32[1]{0}', space=sflag, size = 0x4, scoped, tag = 'scoped memory for tpu_custom_call.1']
    #allocation7 [shape = 'u8[16384]{0}', space=vmem, size = 0x4000, scoped, tag = 'input window, operand 2, single buffered']
    #allocation8 [shape = 'u8[8192]{0}', space=vmem, size = 0x2000, scoped, tag = 'output window, operand 0']
    %9 = vsyncpa [#allocation3], 0
    %s10 = scalar_lea.sflag [#allocation3], 1
    %11 = vsyncpa %s10, 0
    %12 = vsyncpa [#allocation6], 0
    %13 = vsyncpa [#allocation4], 0
    %s14 = scalar_lea.sflag [#allocation4], 1
    %15 = vsyncpa %s14, 0
    loop: start=0, step=1, limit=4
    $region2: #{tpu_custom_call.1} parent=1 // loop_pre_header
      _
    $region3: #{tpu_custom_call.1} parent=1 // loop_header
      %s17 = sphi 0, %s21
      %p18 = scmp.ge.s32.totalorder %s17, 4
      %s27 = sphi 0, %s29
      %s30 = sphi 0, %s27
      %s31 = sphi 0, %s30
      %s47 = sphi 0, %s31
      %s51 = sphi 0, %s51
      %s53 = sphi 0, %s51
      %s54 = sphi 0, %s53
      %s68 = sphi 0, %s54
      %s72 = sphi 0, %s72
      %s74 = sphi 0, %s72
      %s75 = sphi 0, %s74
      %s89 = sphi 0, %s75
      %s93 = sphi 0, %s93
      %s95 = sphi 0, %s93
      %s96 = sphi 0, %s95
      %s110 = sphi 0, %s96
      %s116 = sphi 0, %s118
      %s119 = sphi 0, %s116
      %s120 = sphi 0, %s119
      %s136 = sphi 0, %s120
    $region4: #{tpu_custom_call.1} parent=1 // loop_header_branch
      %20 = sbr.rel (%p18) target = $region8
    $region5: #{tpu_custom_call.1} parent=1 // loop_body
      %s22 = ssub.s32 %s17, 1
      %s23 = ssub.s32 %s17, 2
      %s24 = sadd.s32 %s17, 1
      %s25 = ssub.s32 %s17, %s24
      %p26 = scmp.eq.s32.totalorder %s25, 0
      %s28 = sadd.s32 %s27, 1
      %s29 = scalar_select %p26, %s27, %s28
      %p32 = pneg %p26
      %p33 = scmp.eq.s32.totalorder %s17, 1
      %p34 = por %p32, %p33
      %p35 = scmp.ne.s32.totalorder %s27, %s30
      %p36 = scmp.eq.s32.totalorder %s17, 0
      %p37 = por %p35, %p36
      %p38 = scmp.ne.s32.totalorder %s27, %s30
      %p39 = scmp.eq.s32.totalorder %s22, 1
      %p40 = por %p38, %p39
      %p41 = scmp.ne.s32.totalorder %s30, %s31
      %p42 = scmp.eq.s32.totalorder %s22, 0
      %p43 = por %p41, %p42
      %p44 = scmp.ne.s32.totalorder %s30, %s31
      %p45 = scmp.eq.s32.totalorder %s23, 1
      %p46 = por %p44, %p45
      %p48 = scmp.ne.s32.totalorder %s31, %s47
      %p49 = scmp.eq.s32.totalorder %s23, 0
      %p50 = por %p48, %p49
      %s52 = sadd.s32 %s51, 1
      %p55 = scmp.eq.s32.totalorder %s17, 1
      %p56 = scmp.ne.s32.totalorder %s51, %s53
      %p57 = scmp.eq.s32.totalorder %s17, 0
      %p58 = por %p56, %p57
      %p59 = scmp.ne.s32.totalorder %s51, %s53
      %p60 = scmp.eq.s32.totalorder %s22, 1
      %p61 = por %p59, %p60
      %p62 = scmp.ne.s32.totalorder %s53, %s54
      %p63 = scmp.eq.s32.totalorder %s22, 0
      %p64 = por %p62, %p63
      %p65 = scmp.ne.s32.totalorder %s53, %s54
      %p66 = scmp.eq.s32.totalorder %s23, 1
      %p67 = por %p65, %p66
      %p69 = scmp.ne.s32.totalorder %s54, %s68
      %p70 = scmp.eq.s32.totalorder %s23, 0
      %p71 = por %p69, %p70
      %s73 = sadd.s32 %s72, 1
      %p76 = scmp.eq.s32.totalorder %s17, 1
      %p77 = scmp.ne.s32.totalorder %s72, %s74
      %p78 = scmp.eq.s32.totalorder %s17, 0
      %p79 = por %p77, %p78
      %p80 = scmp.ne.s32.totalorder %s72, %s74
      %p81 = scmp.eq.s32.totalorder %s22, 1
      %p82 = por %p80, %p81
      %p83 = scmp.ne.s32.totalorder %s74, %s75
      %p84 = scmp.eq.s32.totalorder %s22, 0
      %p85 = por %p83, %p84
      %p86 = scmp.ne.s32.totalorder %s74, %s75
      %p87 = scmp.eq.s32.totalorder %s23, 1
      %p88 = por %p86, %p87
      %p90 = scmp.ne.s32.totalorder %s75, %s89
      %p91 = scmp.eq.s32.totalorder %s23, 0
      %p92 = por %p90, %p91
      %s94 = sadd.s32 %s93, 1
      %p97 = scmp.eq.s32.totalorder %s17, 1
      %p98 = scmp.ne.s32.totalorder %s93, %s95
      %p99 = scmp.eq.s32.totalorder %s17, 0
      %p100 = por %p98, %p99
      %p101 = scmp.ne.s32.totalorder %s93, %s95
      %p102 = scmp.eq.s32.totalorder %s22, 1
      %p103 = por %p101, %p102
      %p104 = scmp.ne.s32.totalorder %s95, %s96
      %p105 = scmp.eq.s32.totalorder %s22, 0
      %p106 = por %p104, %p105
      %p107 = scmp.ne.s32.totalorder %s95, %s96
      %p108 = scmp.eq.s32.totalorder %s23, 1
      %p109 = por %p107, %p108
      %p111 = scmp.ne.s32.totalorder %s96, %s110
      %p112 = scmp.eq.s32.totalorder %s23, 0
      %p113 = por %p111, %p112
      %s114 = ssub.s32 %s17, %s24
      %p115 = scmp.eq.s32.totalorder %s114, 0
      %s117 = sadd.s32 %s116, 1
      %s118 = scalar_select %p115, %s116, %s117
      %p121 = pneg %p115
      %p122 = scmp.eq.s32.totalorder %s17, 1
      %p123 = por %p121, %p122
      %p124 = scmp.ne.s32.totalorder %s116, %s119
      %p125 = scmp.eq.s32.totalorder %s17, 0
      %p126 = por %p124, %p125
      %p127 = scmp.ne.s32.totalorder %s116, %s119
      %p128 = scmp.eq.s32.totalorder %s22, 1
      %p129 = por %p127, %p128
      %p130 = scmp.ne.s32.totalorder %s119, %s120
      %p131 = scmp.eq.s32.totalorder %s22, 0
      %p132 = por %p130, %p131
      %p133 = scmp.ne.s32.totalorder %s119, %s120
      %p134 = scmp.eq.s32.totalorder %s23, 1
      %p135 = por %p133, %p134
      %p137 = scmp.ne.s32.totalorder %s120, %s136
      %p138 = scmp.eq.s32.totalorder %s23, 0
      %p139 = por %p137, %p138
      %p140 = scmp.le.s32.totalorder 1, %s17
      %p141 = scmp.lt.s32.totalorder %s17, 3
      %p142 = pnand %p140, %p141
      %p143 = pneg %p142
      // Predicated region
      $region9: #{tpu_custom_call.1} parent=5 // pred_check
        _
      $region10: #{tpu_custom_call.1} parent=5 // pred_check_branch
        %145 = sbr.rel (%p142) target = $region12
      $region11: #{tpu_custom_call.1} parent=5 // pred_region
        %s146 = ssub.s32 %s17, 1
        // Predicated region
        $region13: #{tpu_custom_call.1} parent=11 // pred_check
          %p147 = pneg %p64
        $region14: #{tpu_custom_call.1} parent=11 // pred_check_branch
          %149 = sbr.rel (%p147) target = $region16
        $region15: #{tpu_custom_call.1} parent=11 // pred_region
          %151 = vsyncadd [#allocation6], 0
          %s152 = sshll.u32 %s1, 4
          %s153 = int_to_ptr.hbm [resolvable:$true] %s152
          %s154 = sshll.u32 [#allocation5], 4
          %s155 = int_to_ptr.vmem [resolvable:$true] %s154
          %160 = dma.hbm_to_vmem [thread:$0]  %s153, 512, %s155, [#allocation6], 128, 128, 8
        $region16: #{tpu_custom_call.1} parent=11 // pred_fallthru
          _
        // Predicated region
        $region17: #{tpu_custom_call.1} parent=11 // pred_check
          %p161 = pneg %p85
        $region18: #{tpu_custom_call.1} parent=11 // pred_check_branch
          %163 = sbr.rel (%p161) target = $region20
        $region19: #{tpu_custom_call.1} parent=11 // pred_region
          %165 = vsyncadd [#allocation6], 0
          %s166 = sshll.u32 %s2, 4
          %s167 = int_to_ptr.hbm [resolvable:$true] %s166
          %s168 = sshll.u32 [#allocation7], 4
          %s169 = int_to_ptr.vmem [resolvable:$true] %s168
          %174 = dma.hbm_to_vmem [thread:$0]  %s167, 512, %s169, [#allocation6], 128, 128, 8
        $region20: #{tpu_custom_call.1} parent=11 // pred_fallthru
          _
        // Predicated region
        $region21: #{tpu_custom_call.1} parent=11 // pred_check
          %p175 = pneg %p106
        $region22: #{tpu_custom_call.1} parent=11 // pred_check_branch
          %177 = sbr.rel (%p175) target = $region24
        $region23: #{tpu_custom_call.1} parent=11 // pred_region
          _
        $region24: #{tpu_custom_call.1} parent=11 // pred_fallthru
          _
      $region12: #{tpu_custom_call.1} parent=5 // pred_fallthru
        _
      %p178 = scmp.lt.s32.totalorder %s17, 2
      // Predicated region
      $region25: #{tpu_custom_call.1} parent=5 // pred_check
        %p179 = pneg %p178
      $region26: #{tpu_custom_call.1} parent=5 // pred_check_branch
        %181 = sbr.rel (%p179) target = $region28
      $region27: #{tpu_custom_call.1} parent=5 // pred_region
        // Predicated region
        $region29: #{tpu_custom_call.1} parent=27 // pred_check
          %p182 = pneg %p37
        $region30: #{tpu_custom_call.1} parent=27 // pred_check_branch
          %184 = sbr.rel (%p182) target = $region32
        $region31: #{tpu_custom_call.1} parent=27 // pred_region
          %s185 = sand.u32 %s27, 1
          %s186 = scalar_lea.sflag [#allocation3], %s185
          %s187 = sand.u32 %s27, 1
          %s188 = smul.addr %s187, 8
          %s189 = scalar_lea.vmem [#allocation2], %s188
          %191 = vsyncadd %s186, 0
          %s192 = smul.addr %s17, 8
          %s193 = scalar_lea.hbm %s0, %s192
          %s195 = sshll.u32 %s193, 4
          %s196 = int_to_ptr.hbm [resolvable:$true] %s195
          %s197 = sshll.u32 %s189, 4
          %s198 = int_to_ptr.vmem [resolvable:$true] %s197
          %200 = dma.hbm_to_vmem [thread:$0]  %s196, 128, %s198, %s186
        $region32: #{tpu_custom_call.1} parent=27 // pred_fallthru
          _
      $region28: #{tpu_custom_call.1} parent=5 // pred_fallthru
        _
      %p201 = scmp.le.s32.totalorder 1, %s17
      %p202 = scmp.lt.s32.totalorder %s17, 3
      %p203 = pnand %p201, %p202
      %p204 = pneg %p203
      // Predicated region
      $region33: #{tpu_custom_call.1} parent=5 // pred_check
        _
      $region34: #{tpu_custom_call.1} parent=5 // pred_check_branch
        %206 = sbr.rel (%p203) target = $region36
      $region35: #{tpu_custom_call.1} parent=5 // pred_region
        %s207 = ssub.s32 %s17, 1
        %s208 = sand.u32 %s30, 1
        %s209 = scalar_lea.sflag [#allocation3], %s208
        %s210 = sand.u32 %s30, 1
        %s211 = smul.addr %s210, 8
        %s212 = scalar_lea.vmem [#allocation2], %s211
        // Predicated region
        $region37: #{tpu_custom_call.1} parent=35 // pred_check
          %p213 = pneg %p43
        $region38: #{tpu_custom_call.1} parent=35 // pred_check_branch
          %215 = sbr.rel (%p213) target = $region40
        $region39: #{tpu_custom_call.1} parent=35 // pred_region
          %217 = dma.done %s209, 128
        $region40: #{tpu_custom_call.1} parent=35 // pred_fallthru
          _
        // Predicated region
        $region41: #{tpu_custom_call.1} parent=35 // pred_check
          %p218 = pneg %p64
        $region42: #{tpu_custom_call.1} parent=35 // pred_check_branch
          %220 = sbr.rel (%p218) target = $region44
        $region43: #{tpu_custom_call.1} parent=35 // pred_region
          %222 = dma.done [#allocation6], 512
        $region44: #{tpu_custom_call.1} parent=35 // pred_fallthru
          _
        // Predicated region
        $region45: #{tpu_custom_call.1} parent=35 // pred_check
          %p223 = pneg %p85
        $region46: #{tpu_custom_call.1} parent=35 // pred_check_branch
          %225 = sbr.rel (%p223) target = $region48
        $region47: #{tpu_custom_call.1} parent=35 // pred_region
          %227 = dma.done [#allocation6], 512
        $region48: #{tpu_custom_call.1} parent=35 // pred_fallthru
          _
        %s228 = sand.u32 %s30, 1
        %s229 = scalar_lea.sflag [#allocation3], %s228
        %s230 = sand.u32 %s30, 1
        %s231 = smul.addr %s230, 8
        %s232 = scalar_lea.vmem [#allocation2], %s231
        %p233 = pneg %p43
        %p234 = pneg %p40
        %p235 = pneg %p64
        %p236 = pneg %p61
        %p237 = pneg %p85
        %p238 = pneg %p82
        %p239 = pneg %p106
        %p240 = pneg %p103
        %p241 = pneg %p132
        %p242 = pneg %p129
        %s243 = sand.u32 %s119, 1
        %s244 = scalar_lea.sflag [#allocation4], %s243
        %s245 = sand.u32 %s119, 1
        %s246 = smul.addr %s245, 8
        %s247 = scalar_lea.vmem [#allocation8], %s246
        %v248 = vld [vmem:[%s212] sm:$0xff]
        %v249 = vld [vmem:[#allocation5] sm:$0xff]
        %v250 = vld [vmem:[#allocation5 + $0x8] sm:$0xff]
        %v251 = vld [vmem:[#allocation5 + $0x10] sm:$0xff]
        %v252 = vld [vmem:[#allocation5 + $0x18] sm:$0xff]
        %vm253 = vcmask 261120
        %v255 = vsel %vm253, %v248, 0
        %257 = vmatpush.msra.mxu0 0.0
        %258 = vmatpush.msra.mxu0 0.0
        %259 = vmatpush.msra.mxu0 0.0
        %260 = vmatpush.msra.mxu0 0.0
        %261 = vmatpush.msra.mxu0 0.0
        %262 = vmatpush.msra.mxu0 0.0
        %263 = vmatpush.msra.mxu0 0.0
        %264 = vmatpush.msra.mxu0 0.0
        %265 = vmatpush.msra.mxu0 0.0
        %266 = vmatpush.msra.mxu0 0.0
        %267 = vmatpush.msra.mxu0 0.0
        %268 = vmatpush.msra.mxu0 0.0
        %269 = vmatpush.msra.mxu0 %v252
        %270 = vmatpush.msra.mxu0 %v251
        %271 = vmatpush.msra.mxu0 %v250
        %272 = vmatpush.msra.mxu0 %v249
        %273 = vmatmul.f32.gmra.mxu0 %v255
        %v274 = vpop.f32.mrf.mxu0
        %v275 = vadd.f32 0.0, %v274
        %276 = vdwg.mxu0
        %v277 = vmul.f32 %v275, 0.35355338
        %v278 = vlaneseq
        %v279 = vshrl.u32 %v278, 7
        %v280 = vlaneseq
        %v281 = vand.u32 %v280, 127
        %vm282 = vcmp.ge.s32.totalorder %v279, %v281
        %284 = vrot.lane.b32.xlu0 %v275, 96
        %v285 = vpop.permute.xlu0 %284
        %vm286 = vcmask 64512
        %v288 = vsel %vm286, %v277, 0
        %v290 = vsel %vm286, %v285, 0
        %292 = vmatpush.xpose.msra.mxu0 0.0
        %293 = vmatpush.xpose.msra.mxu0 0.0
        %294 = vmatpush.xpose.msra.mxu0 0.0
        %295 = vmatpush.xpose.msra.mxu0 0.0
        %296 = vmatpush.xpose.msra.mxu0 0.0
        %297 = vmatpush.xpose.msra.mxu0 0.0
        %298 = vmatpush.xpose.msra.mxu0 0.0
        %299 = vmatpush.xpose.msra.mxu0 0.0
        %300 = vmatpush.xpose.msra.mxu0 0.0
        %301 = vmatpush.xpose.msra.mxu0 0.0
        %302 = vmatpush.xpose.msra.mxu0 0.0
        %303 = vmatpush.xpose.msra.mxu0 0.0
        %304 = vmatpush.xpose.msra.mxu0 0.0
        %305 = vmatpush.xpose.msra.mxu0 0.0
        %306 = vmatpush.xpose.msra.mxu0 0.0
        %307 = vmatpush.xpose.msra.mxu0 %v290
        %308 = vmatmul.f32.gmra.mxu0 %v288
        %v309 = vpop.f32.mrf.mxu0
        %v310 = vadd.f32 0.0, %v309
        %311 = vdwg.mxu0
        %v312 = vsel %vm282, %v310, -inf
        %v313 = vsel %vm286, %v312, -inf
        %314 = vmax.xlane.f32.xlu0 %v313
        %v315 = vpop.xlane.xlu0 %314
        %v316 = vsub.f32 %v312, %v315
        %v317 = vmul.f32 %v316, 1.442695
        %v318 = vpow.pop %v317
        %v319 = vsel %vm286, %v318, 0.0
        %320 = vadd.xlane.f32.xlu0 %v319
        %v321 = vpop.xlane.xlu0 %320
        %322 = vrot.lane.b32.xlu0 %v275, 64
        %v323 = vpop.permute.xlu0 %322
        %v326 = vsel %vm286, %v318, 0
        %328 = vmatpush.msra.mxu0 0.0
        %329 = vmatpush.msra.mxu0 0.0
        %330 = vmatpush.msra.mxu0 0.0
        %331 = vmatpush.msra.mxu0 0.0
        %332 = vmatpush.msra.mxu0 0.0
        %333 = vmatpush.msra.mxu0 0.0
        %334 = vmatpush.msra.mxu0 0.0
        %335 = vmatpush.msra.mxu0 0.0
        %336 = vmatpush.msra.mxu0 0.0
        %337 = vmatpush.msra.mxu0 0.0
        %338 = vmatpush.msra.mxu0 0.0
        %339 = vmatpush.msra.mxu0 0.0
        %340 = vmatpush.msra.mxu0 0.0
        %341 = vmatpush.msra.mxu0 0.0
        %342 = vmatpush.msra.mxu0 0.0
        %343 = vmatpush.msra.mxu0 %v323
        %344 = vmatmul.f32.gmra.mxu0 %v326
        %v345 = vpop.f32.mrf.mxu0
        %v346 = vadd.f32 0.0, %v345
        %347 = vdwg.mxu0
        %v348 = vrcp.pop %v321
        %v349 = vmul.f32 %v321, %v348
        %v350 = vsub.f32 1.0, %v349
        %v351 = vmul.f32 %v348, %v350
        %v352 = vadd.f32 %v348, %v351
        %vm353 = vweird.f32 %v321
        %vm354 = vweird.f32 %v348
        %vm355 = vmor %vm353, %vm354
        %v356 = vsel %vm355, %v348, %v352
        %v357 = vand.u32 2147483647, %v321
        %vm358 = vcmp.eq.f32.partialorder %v357, 8.507059e+37
        %v359 = vand.u32 %v321, 2147483648
        %v360 = vor.u32 1.1754944e-38, %v359
        %v361 = vsel %vm358, %v360, %v356
        %v362 = vmul.f32 %v346, %v361
        %363 = vrot.lane.b32.xlu0 %v277, 120
        %v364 = vpop.permute.xlu0 %363
        %365 = vrot.lane.b32.xlu0 %v275, 88
        %v366 = vpop.permute.xlu0 %365
        %v367 = vsel %vm286, %v364, 0
        %v369 = vsel %vm286, %v366, 0
        %371 = vmatpush.xpose.msra.mxu0 0.0
        %372 = vmatpush.xpose.msra.mxu0 0.0
        %373 = vmatpush.xpose.msra.mxu0 0.0
        %374 = vmatpush.xpose.msra.mxu0 0.0
        %375 = vmatpush.xpose.msra.mxu0 0.0
        %376 = vmatpush.xpose.msra.mxu0 0.0
        %377 = vmatpush.xpose.msra.mxu0 0.0
        %378 = vmatpush.xpose.msra.mxu0 0.0
        %379 = vmatpush.xpose.msra.mxu0 0.0
        %380 = vmatpush.xpose.msra.mxu0 0.0
        %381 = vmatpush.xpose.msra.mxu0 0.0
        %382 = vmatpush.xpose.msra.mxu0 0.0
        %383 = vmatpush.xpose.msra.mxu0 0.0
        %384 = vmatpush.xpose.msra.mxu0 0.0
        %385 = vmatpush.xpose.msra.mxu0 0.0
        %386 = vmatpush.xpose.msra.mxu0 %v369
        %387 = vmatmul.f32.gmra.mxu0 %v367
        %v388 = vpop.f32.mrf.mxu0
        %v389 = vadd.f32 0.0, %v388
        %390 = vdwg.mxu0
        %v391 = vsel %vm282, %v389, -inf
        %v392 = vsel %vm286, %v391, -inf
        %393 = vmax.xlane.f32.xlu0 %v392
        %v394 = vpop.xlane.xlu0 %393
        %v395 = vsub.f32 %v391, %v394
        %v396 = vmul.f32 %v395, 1.442695
        %v397 = vpow.pop %v396
        %v398 = vsel %vm286, %v397, 0.0
        %399 = vadd.xlane.f32.xlu0 %v398
        %v400 = vpop.xlane.xlu0 %399
        %401 = vrot.lane.b32.xlu0 %v275, 56
        %v402 = vpop.permute.xlu0 %401
        %v405 = vsel %vm286, %v397, 0
        %407 = vmatpush.msra.mxu0 0.0
        %408 = vmatpush.msra.mxu0 0.0
        %409 = vmatpush.msra.mxu0 0.0
        %410 = vmatpush.msra.mxu0 0.0
        %411 = vmatpush.msra.mxu0 0.0
        %412 = vmatpush.msra.mxu0 0.0
        %413 = vmatpush.msra.mxu0 0.0
        %414 = vmatpush.msra.mxu0 0.0
        %415 = vmatpush.msra.mxu0 0.0
        %416 = vmatpush.msra.mxu0 0.0
        %417 = vmatpush.msra.mxu0 0.0
        %418 = vmatpush.msra.mxu0 0.0
        %419 = vmatpush.msra.mxu0 0.0
        %420 = vmatpush.msra.mxu0 0.0
        %421 = vmatpush.msra.mxu0 0.0
        %422 = vmatpush.msra.mxu0 %v402
        %423 = vmatmul.f32.gmra.mxu0 %v405
        %v424 = vpop.f32.mrf.mxu0
        %v425 = vadd.f32 0.0, %v424
        %426 = vdwg.mxu0
        %v427 = vrcp.pop %v400
        %v428 = vmul.f32 %v400, %v427
        %v429 = vsub.f32 1.0, %v428
        %v430 = vmul.f32 %v427, %v429
        %v431 = vadd.f32 %v427, %v430
        %vm432 = vweird.f32 %v400
        %vm433 = vweird.f32 %v427
        %vm434 = vmor %vm432, %vm433
        %v435 = vsel %vm434, %v427, %v431
        %v436 = vand.u32 2147483647, %v400
        %vm437 = vcmp.eq.f32.partialorder %v436, 8.507059e+37
        %v438 = vand.u32 %v400, 2147483648
        %v439 = vor.u32 1.1754944e-38, %v438
        %v440 = vsel %vm437, %v439, %v435
        %v441 = vmul.f32 %v425, %v440
        %442 = vrot.lane.b32.xlu0 %v277, 112
        %v443 = vpop.permute.xlu0 %442
        %444 = vrot.lane.b32.xlu0 %v275, 80
        %v445 = vpop.permute.xlu0 %444
        %v446 = vsel %vm286, %v443, 0
        %v448 = vsel %vm286, %v445, 0
        %450 = vmatpush.xpose.msra.mxu0 0.0
        %451 = vmatpush.xpose.msra.mxu0 0.0
        %452 = vmatpush.xpose.msra.mxu0 0.0
        %453 = vmatpush.xpose.msra.mxu0 0.0
        %454 = vmatpush.xpose.msra.mxu0 0.0
        %455 = vmatpush.xpose.msra.mxu0 0.0
        %456 = vmatpush.xpose.msra.mxu0 0.0
        %457 = vmatpush.xpose.msra.mxu0 0.0
        %458 = vmatpush.xpose.msra.mxu0 0.0
        %459 = vmatpush.xpose.msra.mxu0 0.0
        %460 = vmatpush.xpose.msra.mxu0 0.0
        %461 = vmatpush.xpose.msra.mxu0 0.0
        %462 = vmatpush.xpose.msra.mxu0 0.0
        %463 = vmatpush.xpose.msra.mxu0 0.0
        %464 = vmatpush.xpose.msra.mxu0 0.0
        %465 = vmatpush.xpose.msra.mxu0 %v448
        %466 = vmatmul.f32.gmra.mxu0 %v446
        %v467 = vpop.f32.mrf.mxu0
        %v468 = vadd.f32 0.0, %v467
        %469 = vdwg.mxu0
        %v470 = vsel %vm282, %v468, -inf
        %v471 = vsel %vm286, %v470, -inf
        %472 = vmax.xlane.f32.xlu0 %v471
        %v473 = vpop.xlane.xlu0 %472
        %v474 = vsub.f32 %v470, %v473
        %v475 = vmul.f32 %v474, 1.442695
        %v476 = vpow.pop %v475
        %v477 = vsel %vm286, %v476, 0.0
        %478 = vadd.xlane.f32.xlu0 %v477
        %v479 = vpop.xlane.xlu0 %478
        %480 = vrot.lane.b32.xlu0 %v275, 48
        %v481 = vpop.permute.xlu0 %480
        %v484 = vsel %vm286, %v476, 0
        %486 = vmatpush.msra.mxu0 0.0
        %487 = vmatpush.msra.mxu0 0.0
        %488 = vmatpush.msra.mxu0 0.0
        %489 = vmatpush.msra.mxu0 0.0
        %490 = vmatpush.msra.mxu0 0.0
        %491 = vmatpush.msra.mxu0 0.0
        %492 = vmatpush.msra.mxu0 0.0
        %493 = vmatpush.msra.mxu0 0.0
        %494 = vmatpush.msra.mxu0 0.0
        %495 = vmatpush.msra.mxu0 0.0
        %496 = vmatpush.msra.mxu0 0.0
        %497 = vmatpush.msra.mxu0 0.0
        %498 = vmatpush.msra.mxu0 0.0
        %499 = vmatpush.msra.mxu0 0.0
        %500 = vmatpush.msra.mxu0 0.0
        %501 = vmatpush.msra.mxu0 %v481
        %502 = vmatmul.f32.gmra.mxu0 %v484
        %v503 = vpop.f32.mrf.mxu0
        %v504 = vadd.f32 0.0, %v503
        %505 = vdwg.mxu0
        %v506 = vrcp.pop %v479
        %v507 = vmul.f32 %v479, %v506
        %v508 = vsub.f32 1.0, %v507
        %v509 = vmul.f32 %v506, %v508
        %v510 = vadd.f32 %v506, %v509
        %vm511 = vweird.f32 %v479
        %vm512 = vweird.f32 %v506
        %vm513 = vmor %vm511, %vm512
        %v514 = vsel %vm513, %v506, %v510
        %v515 = vand.u32 2147483647, %v479
        %vm516 = vcmp.eq.f32.partialorder %v515, 8.507059e+37
        %v517 = vand.u32 %v479, 2147483648
        %v518 = vor.u32 1.1754944e-38, %v517
        %v519 = vsel %vm516, %v518, %v514
        %v520 = vmul.f32 %v504, %v519
        %521 = vrot.lane.b32.xlu0 %v277, 104
        %v522 = vpop.permute.xlu0 %521
        %523 = vrot.lane.b32.xlu0 %v275, 72
        %v524 = vpop.permute.xlu0 %523
        %v525 = vsel %vm286, %v522, 0
        %v527 = vsel %vm286, %v524, 0
        %529 = vmatpush.xpose.msra.mxu0 0.0
        %530 = vmatpush.xpose.msra.mxu0 0.0
        %531 = vmatpush.xpose.msra.mxu0 0.0
        %532 = vmatpush.xpose.msra.mxu0 0.0
        %533 = vmatpush.xpose.msra.mxu0 0.0
        %534 = vmatpush.xpose.msra.mxu0 0.0
        %535 = vmatpush.xpose.msra.mxu0 0.0
        %536 = vmatpush.xpose.msra.mxu0 0.0
        %537 = vmatpush.xpose.msra.mxu0 0.0
        %538 = vmatpush.xpose.msra.mxu0 0.0
        %539 = vmatpush.xpose.msra.mxu0 0.0
        %540 = vmatpush.xpose.msra.mxu0 0.0
        %541 = vmatpush.xpose.msra.mxu0 0.0
        %542 = vmatpush.xpose.msra.mxu0 0.0
        %543 = vmatpush.xpose.msra.mxu0 0.0
        %544 = vmatpush.xpose.msra.mxu0 %v527
        %545 = vmatmul.f32.gmra.mxu0 %v525
        %v546 = vpop.f32.mrf.mxu0
        %v547 = vadd.f32 0.0, %v546
        %548 = vdwg.mxu0
        %v549 = vsel %vm282, %v547, -inf
        %v550 = vsel %vm286, %v549, -inf
        %551 = vmax.xlane.f32.xlu0 %v550
        %v552 = vpop.xlane.xlu0 %551
        %v553 = vsub.f32 %v549, %v552
        %v554 = vmul.f32 %v553, 1.442695
        %v555 = vpow.pop %v554
        %v556 = vsel %vm286, %v555, 0.0
        %557 = vadd.xlane.f32.xlu0 %v556
        %v558 = vpop.xlane.xlu0 %557
        %559 = vrot.lane.b32.xlu0 %v275, 40
        %v560 = vpop.permute.xlu0 %559
        %v563 = vsel %vm286, %v555, 0
        %565 = vmatpush.msra.mxu0 0.0
        %566 = vmatpush.msra.mxu0 0.0
        %567 = vmatpush.msra.mxu0 0.0
        %568 = vmatpush.msra.mxu0 0.0
        %569 = vmatpush.msra.mxu0 0.0
        %570 = vmatpush.msra.mxu0 0.0
        %571 = vmatpush.msra.mxu0 0.0
        %572 = vmatpush.msra.mxu0 0.0
        %573 = vmatpush.msra.mxu0 0.0
        %574 = vmatpush.msra.mxu0 0.0
        %575 = vmatpush.msra.mxu0 0.0
        %576 = vmatpush.msra.mxu0 0.0
        %577 = vmatpush.msra.mxu0 0.0
        %578 = vmatpush.msra.mxu0 0.0
        %579 = vmatpush.msra.mxu0 0.0
        %580 = vmatpush.msra.mxu0 %v560
        %581 = vmatmul.f32.gmra.mxu0 %v563
        %v582 = vpop.f32.mrf.mxu0
        %v583 = vadd.f32 0.0, %v582
        %584 = vdwg.mxu0
        %v585 = vrcp.pop %v558
        %v586 = vmul.f32 %v558, %v585
        %v587 = vsub.f32 1.0, %v586
        %v588 = vmul.f32 %v585, %v587
        %v589 = vadd.f32 %v585, %v588
        %vm590 = vweird.f32 %v558
        %vm591 = vweird.f32 %v585
        %vm592 = vmor %vm590, %vm591
        %v593 = vsel %vm592, %v585, %v589
        %v594 = vand.u32 2147483647, %v558
        %vm595 = vcmp.eq.f32.partialorder %v594, 8.507059e+37
        %v596 = vand.u32 %v558, 2147483648
        %v597 = vor.u32 1.1754944e-38, %v596
        %v598 = vsel %vm595, %v597, %v593
        %v599 = vmul.f32 %v583, %v598
        %601 = vrot.lane.b32.xlu0 %v441, 8
        %v602 = vpop.permute.xlu0 %601
        %605 = vrot.lane.b32.xlu0 %v520, 16
        %v606 = vpop.permute.xlu0 %605
        %609 = vrot.lane.b32.xlu0 %v599, 24
        %v610 = vpop.permute.xlu0 %609
        %v612 = vsel %vm286, %v362, %v602
        %vm613 = vcmask 130048
        %v614 = vsel %vm613, %v612, %v606
        %vm615 = vcmask 195584
        %v616 = vsel %vm615, %v614, %v610
        %v617 = vld [vmem:[#allocation7] sm:$0xff]
        %v618 = vld [vmem:[#allocation7 + $0x8] sm:$0xff]
        %v619 = vld [vmem:[#allocation7 + $0x10] sm:$0xff]
        %v620 = vld [vmem:[#allocation7 + $0x18] sm:$0xff]
        %v621 = vld [vmem:[%s3] sm:$0x1]
        %v623 = vperm.slane %v621, 0
        %v626 = vsel %vm253, %v616, 0
        %628 = vmatpush.msra.mxu0 0.0
        %629 = vmatpush.msra.mxu0 0.0
        %630 = vmatpush.msra.mxu0 0.0
        %631 = vmatpush.msra.mxu0 0.0
        %632 = vmatpush.msra.mxu0 0.0
        %633 = vmatpush.msra.mxu0 0.0
        %634 = vmatpush.msra.mxu0 0.0
        %635 = vmatpush.msra.mxu0 0.0
        %636 = vmatpush.msra.mxu0 0.0
        %637 = vmatpush.msra.mxu0 0.0
        %638 = vmatpush.msra.mxu0 0.0
        %639 = vmatpush.msra.mxu0 0.0
        %640 = vmatpush.msra.mxu0 %v620
        %641 = vmatpush.msra.mxu0 %v619
        %642 = vmatpush.msra.mxu0 %v618
        %643 = vmatpush.msra.mxu0 %v617
        %644 = vmatmul.f32.gmra.mxu0 %v626
        %v645 = vpop.f32.mrf.mxu0
        %v646 = vadd.f32 %v623, %v645
        %647 = vdwg.mxu0
        %648 = vst.msk [vmem:[%s247] sm:$0xff] %vm253, %v646
        %s649 = sand.u32 %s119, 1
        %s650 = scalar_lea.sflag [#allocation4], %s649
        %s651 = sand.u32 %s119, 1
        %s652 = smul.addr %s651, 8
        %s653 = scalar_lea.vmem [#allocation8], %s652
        // Predicated region
        $region49: #{tpu_custom_call.1} parent=35 // pred_check
          %p654 = pneg %p129
        $region50: #{tpu_custom_call.1} parent=35 // pred_check_branch
          %656 = sbr.rel (%p654) target = $region52
        $region51: #{tpu_custom_call.1} parent=35 // pred_region
          %658 = vsyncadd %s650, 0
          %s659 = smul.addr %s22, 8
          %s660 = scalar_lea.hbm %s4, %s659
          %s662 = sshll.u32 %s653, 4
          %s663 = int_to_ptr.vmem [resolvable:$true] %s662
          %s664 = sshll.u32 %s660, 4
          %s665 = int_to_ptr.hbm [resolvable:$true] %s664
          %667 = dma.vmem_to_hbm [thread:$0]  %s663, 128, %s665, %s650
        $region52: #{tpu_custom_call.1} parent=35 // pred_fallthru
          _
      $region36: #{tpu_custom_call.1} parent=5 // pred_fallthru
        _
      %p668 = scmp.le.s32.totalorder 2, %s17
      // Predicated region
      $region53: #{tpu_custom_call.1} parent=5 // pred_check
        %p669 = pneg %p668
      $region54: #{tpu_custom_call.1} parent=5 // pred_check_branch
        %671 = sbr.rel (%p669) target = $region56
      $region55: #{tpu_custom_call.1} parent=5 // pred_region
        %s672 = ssub.s32 %s17, 2
        // Predicated region
        $region57: #{tpu_custom_call.1} parent=55 // pred_check
          %p673 = pneg %p135
        $region58: #{tpu_custom_call.1} parent=55 // pred_check_branch
          %675 = sbr.rel (%p673) target = $region60
        $region59: #{tpu_custom_call.1} parent=55 // pred_region
          %s676 = sand.u32 %s120, 1
          %s677 = scalar_lea.sflag [#allocation4], %s676
          %s678 = sand.u32 %s120, 1
          %s679 = smul.addr %s678, 8
          %s680 = scalar_lea.vmem [#allocation8], %s679
          %682 = dma.done %s677, 128
        $region60: #{tpu_custom_call.1} parent=55 // pred_fallthru
          _
      $region56: #{tpu_custom_call.1} parent=5 // pred_fallthru
        _
    $region6: #{tpu_custom_call.1} parent=1 // loop_footer
      %s21 = sadd.s32 1, %s17
    $region7: #{tpu_custom_call.1} parent=1 // loop_footer_branch
      %16 = sbr.rel target = $region3
    $region8: #{tpu_custom_call.1} parent=1 // loop_exit
      _
    %683 = vsyncpa [#allocation3], 1
    %s684 = scalar_lea.sflag [#allocation3], 1
    %685 = vsyncpa %s684, 1
    %686 = vsyncpa [#allocation6], 1
    %687 = vsyncpa [#allocation4], 1
    %s688 = scalar_lea.sflag [#allocation4], 1
    %689 = vsyncpa %s688, 1

</llo_original>
